<compile_context>
chip_gen: v7x
topology: tpu7x:2x2x1
jax: 0.10.0
libtpu: 0.0.40
codegen_flags: <defaults>
</compile_context>

<pallas_src>
import jax
import jax.numpy as jnp
from jax import lax
from jax.experimental import pallas as pl
from jax.experimental.pallas import tpu as pltpu

LANES = 128


def _cdiv(a, b):
    return (a + b - 1) // b


def _round_up(a, b):
    return _cdiv(a, b) * b


def _row_align(dtype):
    # Second-to-last block dim alignment needed for the packed native tiling of this dtype.
    itemsize = jnp.dtype(dtype).itemsize
    return {1: 32, 2: 16}.get(itemsize, 8)


def _tpu_config():
    """(num_cores, max_tile_rows, vmem_limit_bytes) chosen per chip generation."""
    vmem_cap = 128 << 20
    kind = ""
    try:
        kind = jax.devices()[0].device_kind.lower()
    except Exception:
        pass
    try:
        vmem_cap = int(pltpu.get_tpu_info().vmem_capacity_bytes)
    except Exception:
        pass
    is_v7 = "v7" in kind
    num_cores = 2 if is_v7 else 1
    if is_v7 or vmem_cap < (96 << 20):
        # v7x: 64 MiB VMEM -> 2 MiB/input/step, modest scoped limit.
        return num_cores, 4096, 40 << 20
    # v5e/v6e: 128 MiB VMEM -> 4 MiB/input/step; raise the scoped limit explicitly
    # (v5e default is only 16 MiB).
    return num_cores, 8192, 72 << 20


def _make_kernel(hard_labels, tile_rows, tiles_per_core, valid_rows, needs_mask):
    num_full = valid_rows // tile_rows  # tiles that are completely inside the data

    def accumulate(o_ref, p, t):
        def vsum(x):
            # (tile_rows, LANES) -> (8, LANES): cross-vreg VPU adds, no XLU per step.
            return x.reshape(-1, 8, LANES).sum(axis=0)

        if hard_labels:
            # One transcendental per element; exact for t in {0, 1}.
            x = jnp.where(t > 0.5, p, 1.0 - p)
            bce = -jnp.maximum(jnp.log(x), -100.0)
        else:
            # Faithful PyTorch BCELoss form (supports soft labels); two logs per element.
            log_p = jnp.maximum(jnp.log(p), -100.0)
            log_1mp = jnp.maximum(jnp.log1p(-p), -100.0)
            bce = -(t * log_p + (1.0 - t) * log_1mp)

        o_ref[0, 0] += vsum(bce)    # sum of elementwise BCE
        o_ref[0, 1] += vsum(t * p)  # intersection
        o_ref[0, 2] += vsum(t + p)  # sum(true) + sum(target) folded into one row

    def kernel(p_ref, t_ref, o_ref):
        c = pl.program_id(0)
        i = pl.program_id(1)

        @pl.when(i == 0)
        def _():
            o_ref[...] = jnp.zeros_like(o_ref)

        p = p_ref[...].astype(jnp.float32)
        t = t_ref[...].astype(jnp.float32)

        if not needs_mask:
            accumulate(o_ref, p, t)
        else:
            gt = c * tiles_per_core + i  # global (unclamped) tile index

            @pl.when(gt < num_full)
            def _():
                accumulate(o_ref, p, t)

            @pl.when(gt >= num_full)
            def _():
                # Boundary / duplicate tile: zero-mask rows past the valid data.
                # p=0, t=0 contributes exactly 0 to all three partial sums.
                limit = valid_rows - gt * tile_rows
                row_ids = lax.broadcasted_iota(jnp.int32, (tile_rows, LANES), 0)
                m = row_ids < limit
                accumulate(o_ref, jnp.where(m, p, 0.0), jnp.where(m, t, 0.0))

    return kernel


def bce_dice_loss(target, true, eps=1e-7, hard_labels=True):
    """target: probabilities; true: labels (same shape).

    Pass int8/bf16 labels to minimize HBM traffic (streamed in native dtype).
    Set hard_labels=False if `true` may contain soft (non-{0,1}) labels.
    """
    if true.dtype == jnp.bool_:
        # XLA bitcast from PRED is not allowed (1-bit width); a single cheap convert pass.
        true = true.astype(jnp.int8)

    n_elem = int(target.size)
    p_flat = target.reshape(-1)
    t_flat = true.reshape(-1)

    rem = n_elem % LANES          # sub-128 ragged tail handled by a tiny XLA epilogue
    main = n_elem - rem

    sum_bce = 0.0
    inter = 0.0
    denom = 0.0

    if main > 0:
        rows = main // LANES
        num_cores, max_tile_rows, vmem_limit = _tpu_config()

        align = max(_row_align(target.dtype), _row_align(true.dtype))
        tile_rows = min(max_tile_rows, _round_up(rows, align))
        num_tiles = _cdiv(rows, tile_rows)
        if num_tiles < num_cores:
            num_cores = 1
        tiles_per_core = _cdiv(num_tiles, num_cores)
        # Mask only needed if the grid's row capacity exceeds the actual row count.
        needs_mask = (num_cores * tiles_per_core * tile_rows) != rows

        # Free reshape (main is a multiple of LANES); slice only in the ragged case.
        p2 = (p_flat[:main] if rem else p_flat).reshape(rows, LANES)
        t2 = (t_flat[:main] if rem else t_flat).reshape(rows, LANES)

        def in_map(c, i):
            g = c * tiles_per_core + i
            # Clamp so a duplicate tile (odd tile count on 2 cores) stays in-bounds;
            # the kernel masks its contribution to zero using the unclamped index.
            return (jnp.minimum(g, num_tiles - 1), 0)

        lead_sem = pltpu.CORE_PARALLEL if num_cores > 1 else pltpu.ARBITRARY

        partial = pl.pallas_call(
            _make_kernel(hard_labels, tile_rows, tiles_per_core, rows, needs_mask),
            out_shape=jax.ShapeDtypeStruct((num_cores, 3, 8, LANES), jnp.float32),
            grid_spec=pltpu.PrefetchScalarGridSpec(
                num_scalar_prefetch=0,
                grid=(num_cores, tiles_per_core),
                in_specs=[
                    pl.BlockSpec((tile_rows, LANES), in_map),
                    pl.BlockSpec((tile_rows, LANES), in_map),
                ],
                out_specs=pl.BlockSpec((1, 3, 8, LANES), lambda c, i: (c, 0, 0, 0)),
            ),
            compiler_params=pltpu.CompilerParams(
                dimension_semantics=(lead_sem, pltpu.ARBITRARY),
                vmem_limit_bytes=vmem_limit),
        )(p2, t2)

        sums = jnp.sum(partial, axis=(0, 2, 3))  # (3,) tiny final reduce in XLA
        sum_bce, inter, denom = sums[0], sums[1], sums[2]

    if rem:
        # Exact tiny epilogue on the <128-element tail (no padding of the main streams).
        p_t = p_flat[main:].astype(jnp.float32)
        t_t = t_flat[main:].astype(jnp.float32)
        log_p = jnp.maximum(jnp.log(p_t), -100.0)
        log_1mp = jnp.maximum(jnp.log1p(-p_t), -100.0)
        sum_bce = sum_bce + jnp.sum(-(t_t * log_p + (1.0 - t_t) * log_1mp))
        inter = inter + jnp.sum(t_t * p_t)
        denom = denom + jnp.sum(t_t) + jnp.sum(p_t)

    bce_loss = sum_bce / jnp.float32(n_elem)
    dice = (2.0 * inter + eps) / (denom + eps)
    return bce_loss + 1.0 - dice


def _reference(target, true, eps=1e-7):
    p = target.astype(jnp.float32)
    t = true.astype(jnp.float32)
    bce = -(t * jnp.maximum(jnp.log(p), -100.0)
            + (1.0 - t) * jnp.maximum(jnp.log1p(-p), -100.0))
    bce_loss = jnp.mean(bce)
    inter = jnp.sum(t * p)
    dice = (2.0 * inter + eps) / (jnp.sum(t) + jnp.sum(p) + eps)
    return bce_loss + 1.0 - dice


if __name__ == "__main__":
    key = jax.random.PRNGKey(0)
    k1, k2, k3, k4 = jax.random.split(key, 4)

    # Main test: [B, C, H, W] = [2, 4, 16, 16]  (n_elem multiple of 128 -> zero-copy path)
    shape = (2, 4, 16, 16)
    target = jax.nn.sigmoid(jax.random.normal(k1, shape, dtype=jnp.float32))
    true = (jax.random.uniform(k2, shape) > 0.5).astype(jnp.float32)

    loss = jax.block_until_ready(bce_dice_loss(target, true))
    ref = jax.block_until_ready(_reference(target, true))
    assert jnp.allclose(loss, ref, rtol=1e-5, atol=1e-5), (loss, ref)

    # Two-log (soft-label-capable) path must also match for hard labels.
    loss_soft = jax.block_until_ready(bce_dice_loss(target, true, hard_labels=False))
    assert jnp.allclose(loss_soft, ref, rtol=1e-5, atol=1e-5), (loss_soft, ref)

    # Narrow (int8) label stream: exercises native-dtype streaming + in-kernel row mask.
    true_i8 = true.astype(jnp.int8)
    loss_i8 = jax.block_until_ready(bce_dice_loss(target, true_i8))
    assert jnp.allclose(loss_i8, ref, rtol=1e-5, atol=1e-5), (loss_i8, ref)

    # Ragged size (not a multiple of 128): kernel on the aligned prefix + XLA tail epilogue.
    shape2 = (1, 3, 9, 13)
    target2 = jax.nn.sigmoid(jax.random.normal(k3, shape2, dtype=jnp.float32))
    true2 = (jax.random.uniform(k4, shape2) > 0.5).astype(jnp.float32)
    loss2 = jax.block_until_ready(bce_dice_loss(target2, true2))
    ref2 = jax.block_until_ready(_reference(target2, true2))
    assert jnp.allclose(loss2, ref2, rtol=1e-5, atol=1e-5), (loss2, ref2)

    print("KERNEL_OK")
</pallas_src>

<mosaic_0001>
module attributes {stable_mosaic.version = 11 : i64} {
  func.func @kernel(%arg0: i32, %arg1: i32, %arg2: memref<16x128xf32, #tpu.memory_space<vmem>>, %arg3: memref<16x128xf32, #tpu.memory_space<vmem>>, %arg4: memref<1x3x8x128xf32, #tpu.memory_space<vmem>>) attributes {dimension_semantics = [#tpu.dimension_semantics<arbitrary>, #tpu.dimension_semantics<arbitrary>], iteration_bounds = array<i64: 1, 1>, scalar_prefetch = 0 : i64, scratch_operands = 0 : i64, tpu.core_type = #tpu.core_type<tc>, window_params = [{transform_indices = @transform_0, window_bounds = array<i64: 16, 128>}, {transform_indices = @transform_1, window_bounds = array<i64: 16, 128>}, {transform_indices = @transform_2, window_bounds = array<i64: 1, 3, 8, 128>}]} {
    %c0_i32 = arith.constant 0 : i32
    %0 = arith.cmpi eq, %arg1, %c0_i32 : i32
    %1 = arith.extui %0 : i1 to i32
    %c0_i32_0 = arith.constant 0 : i32
    %2 = arith.cmpi ne, %1, %c0_i32_0 : i32
    scf.if %2 {
      %cst_32 = arith.constant 0.000000e+00 : f32
      %41 = vector.broadcast %cst_32 : f32 to vector<1x3x8x128xf32>
      %c0_33 = arith.constant 0 : index
      %c0_34 = arith.constant 0 : index
      %c0_35 = arith.constant 0 : index
      %c0_36 = arith.constant 0 : index
      %42 = vector.load %arg4[%c0_33, %c0_34, %c0_35, %c0_36] : memref<1x3x8x128xf32, #tpu.memory_space<vmem>>, vector<1x3x8x128xf32>
      tpu.vector_store %arg4[%c0_33, %c0_34, %c0_35, %c0_36], %41 {strides = array<i32>} : memref<1x3x8x128xf32, #tpu.memory_space<vmem>>, vector<1x3x8x128xf32>,
    } else {
    }
    %c0 = arith.constant 0 : index
    %c0_1 = arith.constant 0 : index
    %3 = vector.load %arg2[%c0, %c0_1] : memref<16x128xf32, #tpu.memory_space<vmem>>, vector<16x128xf32>
    %c0_2 = arith.constant 0 : index
    %c0_3 = arith.constant 0 : index
    %4 = vector.load %arg3[%c0_2, %c0_3] : memref<16x128xf32, #tpu.memory_space<vmem>>, vector<16x128xf32>
    %cst = arith.constant 5.000000e-01 : f32
    %5 = vector.broadcast %cst : f32 to vector<16x128xf32>
    %6 = arith.cmpf ogt, %4, %5 : vector<16x128xf32>
    %cst_4 = arith.constant 1.000000e+00 : f32
    %7 = vector.broadcast %cst_4 : f32 to vector<16x128xf32>
    %8 = arith.subf %7, %3 : vector<16x128xf32>
    %9 = arith.select %6, %3, %8 : vector<16x128xi1>, vector<16x128xf32>
    %10 = math.log %9 : vector<16x128xf32>
    %cst_5 = arith.constant -1.000000e+02 : f32
    %11 = vector.broadcast %cst_5 : f32 to vector<16x128xf32>
    %12 = arith.maximumf %10, %11 : vector<16x128xf32>
    %cst_6 = arith.constant 0.000000e+00 : f32
    %13 = vector.broadcast %cst_6 : f32 to vector<16x128xf32>
    %14 = arith.subf %13, %12 : vector<16x128xf32>
    %c0_7 = arith.constant 0 : index
    %c0_8 = arith.constant 0 : index
    %c0_9 = arith.constant 0 : index
    %c0_10 = arith.constant 0 : index
    %15 = vector.load %arg4[%c0_7, %c0_8, %c0_9, %c0_10] : memref<1x3x8x128xf32, #tpu.memory_space<vmem>>, vector<1x1x8x128xf32>
    %16 = vector.shape_cast %15 : vector<1x1x8x128xf32> to vector<8x128xf32>
    %17 = vector.shape_cast %14 : vector<16x128xf32> to vector<2x8x128xf32>
    %cst_11 = arith.constant dense<0.000000e+00> : vector<8x128xf32>
    %18 = vector.multi_reduction <add>, %17, %cst_11 [0] : vector<2x8x128xf32> to vector<8x128xf32>
    %19 = arith.addf %16, %18 : vector<8x128xf32>
    %c0_12 = arith.constant 0 : index
    %c0_13 = arith.constant 0 : index
    %c0_14 = arith.constant 0 : index
    %c0_15 = arith.constant 0 : index
    %20 = vector.load %arg4[%c0_12, %c0_13, %c0_14, %c0_15] : memref<1x3x8x128xf32, #tpu.memory_space<vmem>>, vector<1x1x8x128xf32>
    %21 = vector.shape_cast %20 : vector<1x1x8x128xf32> to vector<8x128xf32>
    %22 = vector.shape_cast %19 : vector<8x128xf32> to vector<1x1x8x128xf32>
    tpu.vector_store %arg4[%c0_12, %c0_13, %c0_14, %c0_15], %22 {strides = array<i32>} : memref<1x3x8x128xf32, #tpu.memory_space<vmem>>, vector<1x1x8x128xf32>,
    %c0_16 = arith.constant 0 : index
    %c1 = arith.constant 1 : index
    %c0_17 = arith.constant 0 : index
    %c0_18 = arith.constant 0 : index
    %23 = vector.load %arg4[%c0_16, %c1, %c0_17, %c0_18] : memref<1x3x8x128xf32, #tpu.memory_space<vmem>>, vector<1x1x8x128xf32>
    %24 = vector.shape_cast %23 : vector<1x1x8x128xf32> to vector<8x128xf32>
    %25 = arith.mulf %4, %3 : vector<16x128xf32>
    %26 = vector.shape_cast %25 : vector<16x128xf32> to vector<2x8x128xf32>
    %cst_19 = arith.constant dense<0.000000e+00> : vector<8x128xf32>
    %27 = vector.multi_reduction <add>, %26, %cst_19 [0] : vector<2x8x128xf32> to vector<8x128xf32>
    %28 = arith.addf %24, %27 : vector<8x128xf32>
    %c0_20 = arith.constant 0 : index
    %c1_21 = arith.constant 1 : index
    %c0_22 = arith.constant 0 : index
    %c0_23 = arith.constant 0 : index
    %29 = vector.load %arg4[%c0_20, %c1_21, %c0_22, %c0_23] : memref<1x3x8x128xf32, #tpu.memory_space<vmem>>, vector<1x1x8x128xf32>
    %30 = vector.shape_cast %29 : vector<1x1x8x128xf32> to vector<8x128xf32>
    %31 = vector.shape_cast %28 : vector<8x128xf32> to vector<1x1x8x128xf32>
    tpu.vector_store %arg4[%c0_20, %c1_21, %c0_22, %c0_23], %31 {strides = array<i32>} : memref<1x3x8x128xf32, #tpu.memory_space<vmem>>, vector<1x1x8x128xf32>,
    %c0_24 = arith.constant 0 : index
    %c2 = arith.constant 2 : index
    %c0_25 = arith.constant 0 : index
    %c0_26 = arith.constant 0 : index
    %32 = vector.load %arg4[%c0_24, %c2, %c0_25, %c0_26] : memref<1x3x8x128xf32, #tpu.memory_space<vmem>>, vector<1x1x8x128xf32>
    %33 = vector.shape_cast %32 : vector<1x1x8x128xf32> to vector<8x128xf32>
    %34 = arith.addf %4, %3 : vector<16x128xf32>
    %35 = vector.shape_cast %34 : vector<16x128xf32> to vector<2x8x128xf32>
    %cst_27 = arith.constant dense<0.000000e+00> : vector<8x128xf32>
    %36 = vector.multi_reduction <add>, %35, %cst_27 [0] : vector<2x8x128xf32> to vector<8x128xf32>
    %37 = arith.addf %33, %36 : vector<8x128xf32>
    %c0_28 = arith.constant 0 : index
    %c2_29 = arith.constant 2 : index
    %c0_30 = arith.constant 0 : index
    %c0_31 = arith.constant 0 : index
    %38 = vector.load %arg4[%c0_28, %c2_29, %c0_30, %c0_31] : memref<1x3x8x128xf32, #tpu.memory_space<vmem>>, vector<1x1x8x128xf32>
    %39 = vector.shape_cast %38 : vector<1x1x8x128xf32> to vector<8x128xf32>
    %40 = vector.shape_cast %37 : vector<8x128xf32> to vector<1x1x8x128xf32>
    tpu.vector_store %arg4[%c0_28, %c2_29, %c0_30, %c0_31], %40 {strides = array<i32>} : memref<1x3x8x128xf32, #tpu.memory_space<vmem>>, vector<1x1x8x128xf32>,
    return
  }
  func.func @transform_0(%arg0: i32, %arg1: i32) -> (i32, i32) {
    %c1_i32 = arith.constant 1 : i32
    %0 = arith.muli %arg0, %c1_i32 : i32
    %1 = arith.addi %0, %arg1 : i32
    %c0_i32 = arith.constant 0 : i32
    %2 = arith.minsi %1, %c0_i32 : i32
    %c0_i32_0 = arith.constant 0 : i32
    %c0_i32_1 = arith.constant 0 : i32
    return %2, %c0_i32_0 : i32, i32
  }
  func.func @transform_1(%arg0: i32, %arg1: i32) -> (i32, i32) {
    %c1_i32 = arith.constant 1 : i32
    %0 = arith.muli %arg0, %c1_i32 : i32
    %1 = arith.addi %0, %arg1 : i32
    %c0_i32 = arith.constant 0 : i32
    %2 = arith.minsi %1, %c0_i32 : i32
    %c0_i32_0 = arith.constant 0 : i32
    %c0_i32_1 = arith.constant 0 : i32
    return %2, %c0_i32_0 : i32, i32
  }
  func.func @transform_2(%arg0: i32, %arg1: i32) -> (i32, i32, i32, i32) {
    %c0_i32 = arith.constant 0 : i32
    %c0_i32_0 = arith.constant 0 : i32
    %c0_i32_1 = arith.constant 0 : i32
    %c0_i32_2 = arith.constant 0 : i32
    return %arg0, %c0_i32, %c0_i32_0, %c0_i32_1 : i32, i32, i32, i32
  }
}

</mosaic_0001>

<llo_original>
// kernel: tpu_custom_call.1
$region0: #{tpu_custom_call.1}
  #allocation0 [shape = 'u32[]', space=smem, size = 0x4, offset = 0x4, fixed_abs, tag = 'smem constant byte address 0x4 - core index']
  #allocation1 [shape = 'u32[144,128]{1,0:T(1,128)}', space=vmem, size = 0x12000, scoped, tag = 'internal scratch']
  %s0 = inlined_call_operand.hbm [shape: f32[16,128], index: 0, kind: input, shape index: {}]
  %s1 = inlined_call_operand.hbm [shape: f32[16,128], index: 1, kind: input, shape index: {}]
  %s2 = inlined_call_operand.hbm [shape: f32[1,3,8,128], index: 2, kind: output, shape index: {}]
  %s3 = sld [smem:[#allocation0]]
  $region30: #{tpu_custom_call.1} parent=0
    _
  %s5 = ssub.s32 1, %s3
  %s6 = scalar_select 0, %s5, %s3
  $region1: #{tpu_custom_call.1} parent=0
    #allocation2 [shape = 'u8[8192]{0}', space=vmem, size = 0x2000, scoped, tag = 'input window, operand 0, single buffered']
    #allocation3 [shape = 's32[1]{0}', space=sflag, size = 0x4, scoped, tag = 'scoped memory for tpu_custom_call.1']
    #allocation4 [shape = 's32[1]{0}', space=sflag, size = 0x4, scoped, tag = 'scoped memory for tpu_custom_call.1']
    #allocation5 [shape = 'u8[8192]{0}', space=vmem, size = 0x2000, scoped, tag = 'input window, operand 1, single buffered']
    #allocation6 [shape = 's32[1]{0}', space=sflag, size = 0x4, scoped, tag = 'scoped memory for tpu_custom_call.1']
    #allocation7 [shape = 'u8[12288]{0}', space=vmem, size = 0x3000, scoped, tag = 'output window, operand 0, single buffered']
    %7 = vsyncpa [#allocation3], 0
    %8 = vsyncpa [#allocation6], 0
    %9 = vsyncpa [#allocation4], 0
    // Predicated region
    $region2: #{tpu_custom_call.1} parent=1 // pred_check
      _
    $region3: #{tpu_custom_call.1} parent=1 // pred_check_branch
      %11 = sbr.rel (0) target = $region5
    $region4: #{tpu_custom_call.1} parent=1 // pred_region
      %s12 = sadd.s32 0, 0
      %p13 = scmp.lt.s32.totalorder %s12, 0
      %s14 = scalar_select %p13, %s12, 0
      %s15 = smul.u32 2, %s14
      %s17 = ssub.s32 256, 256
      %18 = vsyncadd [#allocation3], %s17
      %s19 = smul.addr %s15, 128
      %s20 = scalar_lea.hbm %s0, %s19
      %s21 = sshll.u32 [#allocation2], 4
      %s22 = int_to_ptr.vmem [resolvable:$true] %s21
      %27 = dma.hbm_to_vmem [thread:$0]  %s20, 256, %s22, [#allocation3], 128, 128, 8
    $region5: #{tpu_custom_call.1} parent=1 // pred_fallthru
      _
    // Predicated region
    $region6: #{tpu_custom_call.1} parent=1 // pred_check
      _
    $region7: #{tpu_custom_call.1} parent=1 // pred_check_branch
      %29 = sbr.rel (0) target = $region9
    $region8: #{tpu_custom_call.1} parent=1 // pred_region
      %s30 = sadd.s32 0, 0
      %p31 = scmp.lt.s32.totalorder %s30, 0
      %s32 = scalar_select %p31, %s30, 0
      %s33 = smul.u32 2, %s32
      %s35 = ssub.s32 256, 256
      %36 = vsyncadd [#allocation6], %s35
      %s37 = smul.addr %s33, 128
      %s38 = scalar_lea.hbm %s1, %s37
      %s39 = sshll.u32 [#allocation5], 4
      %s40 = int_to_ptr.vmem [resolvable:$true] %s39
      %45 = dma.hbm_to_vmem [thread:$0]  %s38, 256, %s40, [#allocation6], 128, 128, 8
    $region9: #{tpu_custom_call.1} parent=1 // pred_fallthru
      _
    // Predicated region
    $region10: #{tpu_custom_call.1} parent=1 // pred_check
      _
    $region11: #{tpu_custom_call.1} parent=1 // pred_check_branch
      %47 = sbr.rel (0) target = $region13
    $region12: #{tpu_custom_call.1} parent=1 // pred_region
      %48 = dma.done [#allocation3], 256
    $region13: #{tpu_custom_call.1} parent=1 // pred_fallthru
      _
    // Predicated region
    $region14: #{tpu_custom_call.1} parent=1 // pred_check
      _
    $region15: #{tpu_custom_call.1} parent=1 // pred_check_branch
      %50 = sbr.rel (0) target = $region17
    $region16: #{tpu_custom_call.1} parent=1 // pred_region
      %51 = dma.done [#allocation6], 256
    $region17: #{tpu_custom_call.1} parent=1 // pred_fallthru
      _
    %s52 = sadd.s32 0, 0
    %p53 = scmp.lt.s32.totalorder %s52, 0
    %s54 = scalar_select %p53, %s52, 0
    %s55 = smul.u32 2, %s54
    %s56 = sadd.s32 0, 0
    %p57 = scmp.lt.s32.totalorder %s56, 0
    %s58 = scalar_select %p57, %s56, 0
    %s59 = smul.u32 2, %s58
    %p60 = scmp.eq.s32.totalorder 0, 0
    // Predicated region
    $region18: #{tpu_custom_call.1} parent=1 // pred_check
      %p61 = pneg %p60
    $region19: #{tpu_custom_call.1} parent=1 // pred_check_branch
      %63 = sbr.rel (%p61) target = $region21
    $region20: #{tpu_custom_call.1} parent=1 // pred_region
      %64 = vst [vmem:[#allocation7] sm:$0xff] 0.0
      %65 = vst [vmem:[#allocation7 + $0x8] sm:$0xff] 0.0
      %66 = vst [vmem:[#allocation7 + $0x10] sm:$0xff] 0.0
    $region21: #{tpu_custom_call.1} parent=1 // pred_fallthru
      _
    %v67 = vld [vmem:[#allocation2] sm:$0xff]
    %v68 = vld [vmem:[#allocation2 + $0x8] sm:$0xff]
    %v69 = vld [vmem:[#allocation5] sm:$0xff]
    %v70 = vld [vmem:[#allocation5 + $0x8] sm:$0xff]
    %vm71 = vcmp.gt.f32.partialorder %v69, 0.5
    %vm72 = vcmp.gt.f32.partialorder %v70, 0.5
    %v73 = vsub.f32 1.0, %v67
    %v74 = vsub.f32 1.0, %v68
    %v75 = vsel %vm71, %v67, %v73
    %v76 = vsel %vm72, %v68, %v74
    %v77 = vlog2.pop %v75
    %v78 = vmul.f32 %v77, 0.6931472
    %v79 = vlog2.pop %v76
    %v80 = vmul.f32 %v79, 0.6931472
    %v81 = vmax.f32 %v78, -100.0
    %v82 = vmax.f32 %v80, -100.0
    %v83 = vsub.f32 0.0, %v81
    %v84 = vsub.f32 0.0, %v82
    %v85 = vld [vmem:[#allocation7] sm:$0xff]
    %v86 = vadd.f32 %v83, %v84
    %v87 = vadd.f32 %v85, %v86
    %88 = vst [vmem:[#allocation7] sm:$0xff] %v87
    %s89 = scalar_lea.vmem [#allocation7], 8
    %v90 = vld [vmem:[%s89] sm:$0xff]
    %v91 = vmul.f32 %v69, %v67
    %v92 = vmul.f32 %v70, %v68
    %v93 = vadd.f32 %v91, %v92
    %v94 = vadd.f32 %v90, %v93
    %95 = vst [vmem:[%s89] sm:$0xff] %v94
    %s96 = scalar_lea.vmem [#allocation7], 16
    %v97 = vld [vmem:[%s96] sm:$0xff]
    %v98 = vadd.f32 %v69, %v67
    %v99 = vadd.f32 %v70, %v68
    %v100 = vadd.f32 %v98, %v99
    %v101 = vadd.f32 %v97, %v100
    %102 = vst [vmem:[%s96] sm:$0xff] %v101
    // Predicated region
    $region22: #{tpu_custom_call.1} parent=1 // pred_check
      _
    $region23: #{tpu_custom_call.1} parent=1 // pred_check_branch
      %104 = sbr.rel (0) target = $region25
    $region24: #{tpu_custom_call.1} parent=1 // pred_region
      %s106 = ssub.s32 384, 384
      %107 = vsyncadd [#allocation4], %s106
      %s108 = sshll.u32 [#allocation7], 4
      %s109 = int_to_ptr.vmem [resolvable:$true] %s108
      %114 = dma.vmem_to_hbm [thread:$0]  %s109, 384, %s2, [#allocation4], 128, 128, 8
    $region25: #{tpu_custom_call.1} parent=1 // pred_fallthru
      _
    // Predicated region
    $region26: #{tpu_custom_call.1} parent=1 // pred_check
      _
    $region27: #{tpu_custom_call.1} parent=1 // pred_check_branch
      %116 = sbr.rel (0) target = $region29
    $region28: #{tpu_custom_call.1} parent=1 // pred_region
      %117 = dma.done [#allocation4], 384
    $region29: #{tpu_custom_call.1} parent=1 // pred_fallthru
      _
    %118 = vsyncpa [#allocation3], 1
    %119 = vsyncpa [#allocation6], 1
    %120 = vsyncpa [#allocation4], 1

</llo_original>
